<compile_context>
chip_gen: v7x
topology: tpu7x:2x2x1
jax: 0.10.0
libtpu: 0.0.40
codegen_flags: <defaults>
</compile_context>

<pallas_src>
import jax
import jax.numpy as jnp
from jax.experimental import pallas as pl
from jax.experimental.pallas import tpu as pltpu


def _round_up(x, m):
    return ((x + m - 1) // m) * m


# ---------- fused 1x1 conv (+BN, ReLU) + LSTM input projection (one GEMM) ----
def conv_proj_kernel(x_ref, cw_ref, cb_ref, w_ref, b_ref, o_ref):
    TM, C, B = x_ref.shape
    x = x_ref[...]                              # (TM, C, B), lanes = nbins
    cw = cw_ref[...]                            # (C, B)
    acc = jnp.zeros((TM, B), jnp.float32)
    for c in range(C):                          # small static channel count -> VPU FMAs
        acc = acc + x[:, c, :] * cw[c:c + 1, :]
    h = jnp.maximum(acc + cb_ref[...], 0.0)     # folded BN + ReLU, f32
    # single time-batched input projection for BOTH directions (bf16 MXU GEMM)
    o_ref[...] = (jnp.dot(h.astype(jnp.bfloat16), w_ref[...],
                          preferred_element_type=jnp.float32) + b_ref[...])


def conv_input_projection(x_rows, conv_w, conv_b, wih_bf16, b_gate, *, row_tile=512):
    M, C, B = x_rows.shape
    G = wih_bf16.shape[1]                       # 8*H (fwd|bwd gates)
    # keep the (tm, C, B) input tile under ~4 MiB so it fits the default scoped VMEM
    tm_cap = max(8, ((4 << 20) // (C * B * 4)) // 8 * 8)
    tm = min(row_tile, tm_cap, _round_up(M, 8))
    Mr = _round_up(M, tm)                       # pad rows -> last grid tile is full
    if Mr != M:
        x_rows = jnp.pad(x_rows, ((0, Mr - M), (0, 0), (0, 0)))
    cw = jnp.broadcast_to(conv_w.reshape(C, 1).astype(jnp.float32), (C, B))
    cb = jnp.broadcast_to(conv_b.reshape(1, 1).astype(jnp.float32), (1, B))
    const2 = lambda i: (0, 0)
    return pl.pallas_call(
        conv_proj_kernel,
        grid=(Mr // tm,),
        in_specs=[pl.BlockSpec((tm, C, B), lambda i: (i, 0, 0)),
                  pl.BlockSpec((C, B), const2),
                  pl.BlockSpec((1, B), const2),
                  pl.BlockSpec((B, G), const2),
                  pl.BlockSpec((1, G), const2)],
        out_specs=pl.BlockSpec((tm, G), lambda i: (i, 0)),
        out_shape=jax.ShapeDtypeStruct((Mr, G), jnp.float32),
        compiler_params=pltpu.CompilerParams(dimension_semantics=("parallel",)),
    )(x_rows.astype(jnp.float32), cw, cb, wih_bf16,
      b_gate.reshape(1, G).astype(jnp.float32))


# ----------------- bidirectional LSTM recurrence (chunked pipeline) ----------
def bilstm_kernel(gx_ref, whh_ref, out_ref, h_sc, c_sc):
    TC, Np, G4 = gx_ref.shape
    H = whh_ref.shape[0]
    d = pl.program_id(0)                        # 0 = forward, 1 = backward

    @pl.when(pl.program_id(1) == 0)             # first chunk of this direction
    def _():
        h_sc[...] = jnp.zeros_like(h_sc)
        c_sc[...] = jnp.zeros_like(c_sc)

    whh = whh_ref[...]                          # hoisted: one VMEM load per chunk

    def step(s, carry):
        h, c = carry
        idx = s + d * (TC - 1 - 2 * s)          # forward: s, backward: TC-1-s
        g = gx_ref[idx] + jnp.dot(h, whh, preferred_element_type=jnp.float32)
        # gate columns reordered host-side to (i, f, o, g): one contiguous
        # sigmoid over 3H lanes, tanh over the last H lanes.
        sig = jax.nn.sigmoid(g[:, :3 * H])
        i, f, o = sig[:, :H], sig[:, H:2 * H], sig[:, 2 * H:3 * H]
        gg = jnp.tanh(g[:, 3 * H:])
        c = f * c + i * gg
        h = o * jnp.tanh(c)
        out_ref[idx] = h
        return (h, c)

    h, c = jax.lax.fori_loop(0, TC, step, (h_sc[...], c_sc[...]))
    h_sc[...] = h                               # carry (h, c) to the next chunk
    c_sc[...] = c


def bilstm(gx, whh, *, t_chunk):
    _, Tp, Np, G4 = gx.shape
    H = whh.shape[1]
    nT = Tp // t_chunk

    def gx_map(d, t):
        # forward direction walks chunks 0..nT-1, backward walks nT-1..0
        return (d, t + d * (nT - 1 - 2 * t), 0, 0)

    return pl.pallas_call(
        bilstm_kernel,
        grid=(2, nT),
        in_specs=[pl.BlockSpec((None, t_chunk, Np, G4), gx_map),
                  pl.BlockSpec((None, H, G4), lambda d, t: (d, 0, 0))],
        out_specs=pl.BlockSpec((None, t_chunk, Np, H), gx_map),
        out_shape=jax.ShapeDtypeStruct((2, Tp, Np, H), jnp.float32),
        scratch_shapes=[pltpu.VMEM((Np, H), jnp.float32),
                        pltpu.VMEM((Np, H), jnp.float32)],
        compiler_params=pltpu.CompilerParams(
            dimension_semantics=("parallel", "arbitrary")),
    )(gx, whh)


# ---------------- dense head (Linear + BN1d folded + ReLU), K = 2H -----------
def dense_kernel(h_ref, w_ref, b_ref, o_ref):
    y = (jnp.dot(h_ref[...].astype(jnp.bfloat16), w_ref[...],
                 preferred_element_type=jnp.float32) + b_ref[...])
    o_ref[...] = jnp.maximum(y, 0.0)


def dense_head(hcat, w_bf16, b, *, row_tile=512):
    M, K = hcat.shape
    Nout = w_bf16.shape[1]
    tm = min(row_tile, _round_up(M, 8))
    Mr = _round_up(M, tm)
    if Mr != M:
        hcat = jnp.pad(hcat, ((0, Mr - M), (0, 0)))
    const2 = lambda i: (0, 0)
    return pl.pallas_call(
        dense_kernel,
        grid=(Mr // tm,),
        in_specs=[pl.BlockSpec((tm, K), lambda i: (i, 0)),
                  pl.BlockSpec((K, Nout), const2),
                  pl.BlockSpec((1, Nout), const2)],
        out_specs=pl.BlockSpec((tm, Nout), lambda i: (i, 0)),
        out_shape=jax.ShapeDtypeStruct((Mr, Nout), jnp.float32),
        compiler_params=pltpu.CompilerParams(dimension_semantics=("parallel",)),
    )(hcat, w_bf16, b.reshape(1, Nout).astype(jnp.float32))


# ------------------------------ module forward --------------------------------
def _reorder_gates(w):
    """PyTorch LSTM gate layout (i, f, g, o) -> (i, f, o, g) along the last axis."""
    H = w.shape[-1] // 4
    return jnp.concatenate([w[..., :2 * H], w[..., 3 * H:], w[..., 2 * H:3 * H]],
                           axis=-1)


def lstm_module_forward(x, p, *, row_tile=512, t_chunk=128):
    N, C, nbins, T = x.shape
    H = p['whh_f'].shape[0]
    G4 = 4 * H

    # ---- host-side weight prep (gate reorder, direction concat, bf16 cast) ----
    wih = jnp.concatenate([_reorder_gates(p['wih_f']),
                           _reorder_gates(p['wih_b'])], axis=1).astype(jnp.bfloat16)
    b_gate = jnp.concatenate([_reorder_gates(p['b_f']),
                              _reorder_gates(p['b_b'])], axis=0).astype(jnp.float32)
    whh = jnp.stack([_reorder_gates(p['whh_f']),
                     _reorder_gates(p['whh_b'])], axis=0).astype(jnp.float32)
    dense_w = p['dense_w'].astype(jnp.bfloat16)          # (2H, nbins)

    # [N, C, nbins, T] -> time-major rows (t, n): [T*N, C, nbins]  (no batch pad)
    x_rows = jnp.transpose(x, (3, 0, 1, 2)).astype(jnp.float32).reshape(T * N, C, nbins)

    # fused conv(+BN,ReLU) + time-batched input projection for both directions
    gates = conv_input_projection(x_rows, p['conv_w'], p['conv_b'], wih, b_gate,
                                  row_tile=row_tile)
    gates = gates[:T * N].reshape(T, N, 2, G4)           # split fwd | bwd gate columns
    gx = jnp.transpose(gates, (2, 0, 1, 3))              # (2, T, N, 4H)

    # recurrence padding: batch -> 8-row sublane tile, time -> chunk multiple.
    # Zero gate padding keeps the LSTM state of padded rows/steps exactly zero.
    Np = _round_up(N, 8)
    nT = pl.cdiv(T, t_chunk)
    tc = pl.cdiv(T, nT)
    Tp = nT * tc
    gx = jnp.pad(gx, ((0, 0), (0, Tp - T), (0, Np - N), (0, 0)))

    hout = bilstm(gx, whh, t_chunk=tc)                   # (2, Tp, Np, H)

    # dense head: single GEMM with K = 2H against the fwd|bwd concat
    hf = hout[0, :T, :N].reshape(T * N, H)
    hb = hout[1, :T, :N].reshape(T * N, H)
    hcat = jnp.concatenate([hf, hb], axis=-1)            # (T*N, 2H)
    hd = dense_head(hcat, dense_w, p['dense_b'], row_tile=row_tile)

    out = hd[:T * N].reshape(T, N, 1, nbins)
    return jnp.transpose(out, (1, 2, 3, 0))              # [N, 1, nbins, T]


# ------------------------- deterministic parameters --------------------------
def make_params(key, nin_conv, nin_lstm, nout_lstm):
    H = nout_lstm // 2
    eps = 1e-5
    ks = jax.random.split(key, 16)
    u = lambda k, shape, s=0.1: jax.random.uniform(k, shape, jnp.float32, -s, s)

    # Conv2d(nin_conv, 1, 1, bias=False) + BatchNorm2d(1), eval-mode fold
    conv_w_raw = u(ks[0], (nin_conv,))
    bn1_gamma = 1.0 + u(ks[1], ())
    bn1_beta = u(ks[2], ())
    bn1_mean = u(ks[3], ())
    bn1_var = 1.0 + u(ks[4], (), 0.5)
    s1 = bn1_gamma / jnp.sqrt(bn1_var + eps)
    conv_w = conv_w_raw * s1
    conv_b = jnp.reshape(bn1_beta - bn1_mean * s1, (1,))

    # nn.LSTM(nin_lstm, H, bidirectional=True); biases b_ih + b_hh combined
    # (when loading a real checkpoint, sum b_ih + b_hh into these).
    wih_f = u(ks[5], (nin_lstm, 4 * H))
    whh_f = u(ks[6], (H, 4 * H))
    b_f = u(ks[7], (4 * H,))
    wih_b = u(ks[8], (nin_lstm, 4 * H))
    whh_b = u(ks[9], (H, 4 * H))
    b_b = u(ks[10], (4 * H,))

    # Linear(nout_lstm, nin_lstm) + BatchNorm1d(nin_lstm), eval-mode fold
    dense_w_raw = u(ks[11], (nout_lstm, nin_lstm))
    dense_b_raw = u(ks[12], (nin_lstm,))
    bn2_gamma = 1.0 + u(ks[13], (nin_lstm,))
    bn2_beta = u(ks[14], (nin_lstm,))
    bn2_mean = u(ks[15], (nin_lstm,))
    bn2_var = jnp.ones((nin_lstm,), jnp.float32)
    s2 = bn2_gamma / jnp.sqrt(bn2_var + eps)
    dense_w = dense_w_raw * s2[None, :]
    dense_b = dense_b_raw * s2 + bn2_beta - bn2_mean * s2

    return dict(conv_w=conv_w, conv_b=conv_b,
                wih_f=wih_f, whh_f=whh_f, b_f=b_f,
                wih_b=wih_b, whh_b=whh_b, b_b=b_b,
                dense_w=dense_w, dense_b=dense_b)


# ----------------------------- pure-JAX reference ----------------------------
def reference_forward(x, p):
    N, C, nbins, nframes = x.shape
    h = jnp.einsum('nchw,c->nhw', x, p['conv_w']) + p['conv_b'][0]
    h = jnp.maximum(h, 0.0)                        # [N, nbins, nframes]
    hseq = jnp.transpose(h, (2, 0, 1))             # [T, N, nbins]

    def run_dir(wih, whh, b, reverse):
        H = whh.shape[0]

        def step(carry, x_t):
            hh, cc = carry
            g = x_t @ wih + hh @ whh + b
            i = jax.nn.sigmoid(g[:, :H])
            f = jax.nn.sigmoid(g[:, H:2 * H])
            gg = jnp.tanh(g[:, 2 * H:3 * H])
            o = jax.nn.sigmoid(g[:, 3 * H:])
            cc = f * cc + i * gg
            hh = o * jnp.tanh(cc)
            return (hh, cc), hh

        h0 = jnp.zeros((N, H), jnp.float32)
        c0 = jnp.zeros((N, H), jnp.float32)
        _, hs = jax.lax.scan(step, (h0, c0), hseq, reverse=reverse)
        return hs

    hf = run_dir(p['wih_f'], p['whh_f'], p['b_f'], False)
    hb = run_dir(p['wih_b'], p['whh_b'], p['b_b'], True)
    hl = jnp.concatenate([hf, hb], axis=-1)
    hd = jnp.maximum(hl.reshape(nframes * N, -1) @ p['dense_w'] + p['dense_b'], 0.0)
    out = hd.reshape(nframes, N, 1, nbins)
    return jnp.transpose(out, (1, 2, 3, 0))


if __name__ == "__main__":
    key = jax.random.PRNGKey(0)
    k_x, k_p = jax.random.split(key)

    N, nin_conv, nbins, nframes = 2, 4, 16, 8
    nin_lstm, nout_lstm = nbins, 32          # LSTM hidden = 16 per direction

    x = jax.random.normal(k_x, (N, nin_conv, nbins, nframes), jnp.float32)
    params = make_params(k_p, nin_conv, nin_lstm, nout_lstm)

    out = jax.block_until_ready(lstm_module_forward(x, params))
    assert out.shape == (N, 1, nbins, nframes), out.shape

    ref = jax.block_until_ready(reference_forward(x, params))
    err = float(jnp.max(jnp.abs(out - ref)))
    assert err < 1e-2, f"mismatch vs reference: {err}"

    print("KERNEL_OK")
</pallas_src>

<mosaic_0001>
module attributes {stable_mosaic.version = 11 : i64} {
  func.func @conv_proj_kernel(%arg0: i32, %arg1: memref<16x4x16xf32, #tpu.memory_space<vmem>>, %arg2: memref<4x16xf32, #tpu.memory_space<vmem>>, %arg3: memref<1x16xf32, #tpu.memory_space<vmem>>, %arg4: memref<16x128xbf16, #tpu.memory_space<vmem>>, %arg5: memref<1x128xf32, #tpu.memory_space<vmem>>, %arg6: memref<16x128xf32, #tpu.memory_space<vmem>>) attributes {dimension_semantics = [#tpu.dimension_semantics<parallel>], iteration_bounds = array<i64: 1>, scalar_prefetch = 0 : i64, scratch_operands = 0 : i64, tpu.core_type = #tpu.core_type<tc>, window_params = [{transform_indices = @transform_0, window_bounds = array<i64: 16, 4, 16>}, {pipeline_mode = #tpu.pipeline_mode<synchronous>, transform_indices = @transform_1, window_bounds = array<i64: 4, 16>}, {pipeline_mode = #tpu.pipeline_mode<synchronous>, transform_indices = @transform_2, window_bounds = array<i64: 1, 16>}, {pipeline_mode = #tpu.pipeline_mode<synchronous>, transform_indices = @transform_3, window_bounds = array<i64: 16, 128>}, {pipeline_mode = #tpu.pipeline_mode<synchronous>, transform_indices = @transform_4, window_bounds = array<i64: 1, 128>}, {transform_indices = @transform_5, window_bounds = array<i64: 16, 128>}]} {
    %c0 = arith.constant 0 : index
    %c0_0 = arith.constant 0 : index
    %c0_1 = arith.constant 0 : index
    %0 = vector.load %arg1[%c0, %c0_0, %c0_1] : memref<16x4x16xf32, #tpu.memory_space<vmem>>, vector<16x4x16xf32>
    %c0_2 = arith.constant 0 : index
    %c0_3 = arith.constant 0 : index
    %1 = vector.load %arg2[%c0_2, %c0_3] : memref<4x16xf32, #tpu.memory_space<vmem>>, vector<4x16xf32>
    %cst = arith.constant 0.000000e+00 : f32
    %2 = vector.broadcast %cst : f32 to vector<16x16xf32>
    %3 = vector.extract_strided_slice %0 {offsets = [0, 0, 0], sizes = [16, 1, 16], strides = [1, 1, 1]} : vector<16x4x16xf32> to vector<16x1x16xf32>
    %4 = vector.shape_cast %3 : vector<16x1x16xf32> to vector<16x16xf32>
    %5 = vector.extract_strided_slice %1 {offsets = [0, 0], sizes = [1, 16], strides = [1, 1]} : vector<4x16xf32> to vector<1x16xf32>
    %6 = vector.broadcast %5 : vector<1x16xf32> to vector<16x16xf32>
    %7 = arith.mulf %4, %6 : vector<16x16xf32>
    %8 = arith.addf %2, %7 : vector<16x16xf32>
    %9 = vector.extract_strided_slice %0 {offsets = [0, 1, 0], sizes = [16, 1, 16], strides = [1, 1, 1]} : vector<16x4x16xf32> to vector<16x1x16xf32>
    %10 = vector.shape_cast %9 : vector<16x1x16xf32> to vector<16x16xf32>
    %11 = vector.extract_strided_slice %1 {offsets = [1, 0], sizes = [1, 16], strides = [1, 1]} : vector<4x16xf32> to vector<1x16xf32>
    %12 = vector.broadcast %11 : vector<1x16xf32> to vector<16x16xf32>
    %13 = arith.mulf %10, %12 : vector<16x16xf32>
    %14 = arith.addf %8, %13 : vector<16x16xf32>
    %15 = vector.extract_strided_slice %0 {offsets = [0, 2, 0], sizes = [16, 1, 16], strides = [1, 1, 1]} : vector<16x4x16xf32> to vector<16x1x16xf32>
    %16 = vector.shape_cast %15 : vector<16x1x16xf32> to vector<16x16xf32>
    %17 = vector.extract_strided_slice %1 {offsets = [2, 0], sizes = [1, 16], strides = [1, 1]} : vector<4x16xf32> to vector<1x16xf32>
    %18 = vector.broadcast %17 : vector<1x16xf32> to vector<16x16xf32>
    %19 = arith.mulf %16, %18 : vector<16x16xf32>
    %20 = arith.addf %14, %19 : vector<16x16xf32>
    %21 = vector.extract_strided_slice %0 {offsets = [0, 3, 0], sizes = [16, 1, 16], strides = [1, 1, 1]} : vector<16x4x16xf32> to vector<16x1x16xf32>
    %22 = vector.shape_cast %21 : vector<16x1x16xf32> to vector<16x16xf32>
    %23 = vector.extract_strided_slice %1 {offsets = [3, 0], sizes = [1, 16], strides = [1, 1]} : vector<4x16xf32> to vector<1x16xf32>
    %24 = vector.broadcast %23 : vector<1x16xf32> to vector<16x16xf32>
    %25 = arith.mulf %22, %24 : vector<16x16xf32>
    %26 = arith.addf %20, %25 : vector<16x16xf32>
    %c0_4 = arith.constant 0 : index
    %c0_5 = arith.constant 0 : index
    %27 = vector.load %arg3[%c0_4, %c0_5] : memref<1x16xf32, #tpu.memory_space<vmem>>, vector<1x16xf32>
    %28 = vector.broadcast %27 : vector<1x16xf32> to vector<16x16xf32>
    %29 = arith.addf %26, %28 : vector<16x16xf32>
    %cst_6 = arith.constant 0.000000e+00 : f32
    %30 = vector.broadcast %cst_6 : f32 to vector<16x16xf32>
    %31 = arith.maximumf %29, %30 : vector<16x16xf32>
    %32 = arith.truncf %31 : vector<16x16xf32> to vector<16x16xbf16>
    %c0_7 = arith.constant 0 : index
    %c0_8 = arith.constant 0 : index
    %33 = vector.load %arg4[%c0_7, %c0_8] : memref<16x128xbf16, #tpu.memory_space<vmem>>, vector<16x128xbf16>
    %cst_9 = arith.constant dense<0.000000e+00> : vector<16x128xf32>
    %34 = tpu.matmul %32, %33, %cst_9 {dimension_numbers = #tpu.dot_dimension_numbers<[1], [0], [0], [1], [0, 0, 1, 1], [], []>} : vector<16x16xbf16>, vector<16x128xbf16>, vector<16x128xf32> -> vector<16x128xf32>
    %c0_10 = arith.constant 0 : index
    %c0_11 = arith.constant 0 : index
    %35 = vector.load %arg5[%c0_10, %c0_11] : memref<1x128xf32, #tpu.memory_space<vmem>>, vector<1x128xf32>
    %36 = vector.broadcast %35 : vector<1x128xf32> to vector<16x128xf32>
    %37 = arith.addf %34, %36 : vector<16x128xf32>
    %c0_12 = arith.constant 0 : index
    %c0_13 = arith.constant 0 : index
    %38 = vector.load %arg6[%c0_12, %c0_13] : memref<16x128xf32, #tpu.memory_space<vmem>>, vector<16x128xf32>
    tpu.vector_store %arg6[%c0_12, %c0_13], %37 {strides = array<i32>} : memref<16x128xf32, #tpu.memory_space<vmem>>, vector<16x128xf32>,
    return
  }
  func.func @transform_0(%arg0: i32) -> (i32, i32, i32) {
    %c0_i32 = arith.constant 0 : i32
    %c0_i32_0 = arith.constant 0 : i32
    %c0_i32_1 = arith.constant 0 : i32
    return %arg0, %c0_i32, %c0_i32_0 : i32, i32, i32
  }
  func.func @transform_1(%arg0: i32) -> (i32, i32) {
    %c0_i32 = arith.constant 0 : i32
    %c0_i32_0 = arith.constant 0 : i32
    %c0_i32_1 = arith.constant 0 : i32
    return %c0_i32, %c0_i32_0 : i32, i32
  }
  func.func @transform_2(%arg0: i32) -> (i32, i32) {
    %c0_i32 = arith.constant 0 : i32
    %c0_i32_0 = arith.constant 0 : i32
    %c0_i32_1 = arith.constant 0 : i32
    return %c0_i32, %c0_i32_0 : i32, i32
  }
  func.func @transform_3(%arg0: i32) -> (i32, i32) {
    %c0_i32 = arith.constant 0 : i32
    %c0_i32_0 = arith.constant 0 : i32
    %c0_i32_1 = arith.constant 0 : i32
    return %c0_i32, %c0_i32_0 : i32, i32
  }
  func.func @transform_4(%arg0: i32) -> (i32, i32) {
    %c0_i32 = arith.constant 0 : i32
    %c0_i32_0 = arith.constant 0 : i32
    %c0_i32_1 = arith.constant 0 : i32
    return %c0_i32, %c0_i32_0 : i32, i32
  }
  func.func @transform_5(%arg0: i32) -> (i32, i32) {
    %c0_i32 = arith.constant 0 : i32
    %c0_i32_0 = arith.constant 0 : i32
    return %arg0, %c0_i32 : i32, i32
  }
}

</mosaic_0001>

<llo_original>
// kernel: tpu_custom_call.1
$region0: #{tpu_custom_call.1}
  #allocation0 [shape = 'u32[]', space=smem, size = 0x4, offset = 0x4, fixed_abs, tag = 'smem constant byte address 0x4 - core index']
  #allocation1 [shape = 'u32[144,128]{1,0:T(1,128)}', space=vmem, size = 0x12000, scoped, tag = 'internal scratch']
  %s0 = inlined_call_operand.hbm [shape: f32[16,4,16], index: 0, kind: input, shape index: {}]
  %s1 = inlined_call_operand.hbm [shape: f32[4,16], index: 1, kind: input, shape index: {}]
  %s2 = inlined_call_operand.vmem [shape: f32[1,16], index: 2, kind: input, shape index: {}]
  %s3 = inlined_call_operand.vmem [shape: bf16[16,128], index: 3, kind: input, shape index: {}]
  %s4 = inlined_call_operand.vmem [shape: f32[1,128], index: 4, kind: input, shape index: {}]
  %s5 = inlined_call_operand.hbm [shape: f32[16,128], index: 5, kind: output, shape index: {}]
  %s6 = sld [smem:[#allocation0]]
  $region38: #{tpu_custom_call.1} parent=0
    _
  %s8 = ssub.s32 1, %s6
  %s9 = scalar_select 0, %s8, %s6
  $region1: #{tpu_custom_call.1} parent=0
    #allocation2 [shape = 'u8[32768]{0}', space=vmem, size = 0x8000, scoped, tag = 'input window, operand 0, single buffered']
    #allocation3 [shape = 's32[1]{0}', space=sflag, size = 0x4, scoped, tag = 'scoped memory for tpu_custom_call.1']
    #allocation4 [shape = 's32[1]{0}', space=sflag, size = 0x4, scoped, tag = 'scoped memory for tpu_custom_call.1']
    #allocation5 [shape = 'u8[2048]{0}', space=vmem, size = 0x800, scoped, tag = 'input window, operand 1, single buffered']
    #allocation6 [shape = 's32[1]{0}', space=sflag, size = 0x4, scoped, tag = 'scoped memory for tpu_custom_call.1']
    #allocation7 [shape = 'u8[8192]{0}', space=vmem, size = 0x2000, scoped, tag = 'output window, operand 0, single buffered']
    %10 = vsyncpa [#allocation3], 0
    %11 = vsyncpa [#allocation6], 0
    %12 = vsyncpa [#allocation4], 0
    // Predicated region
    $region2: #{tpu_custom_call.1} parent=1 // pred_check
      _
    $region3: #{tpu_custom_call.1} parent=1 // pred_check_branch
      %14 = sbr.rel (0) target = $region5
    $region4: #{tpu_custom_call.1} parent=1 // pred_region
      %s16 = ssub.s32 1024, 1024
      %17 = vsyncadd [#allocation3], %s16
      %s18 = sshll.u32 [#allocation2], 4
      %s19 = int_to_ptr.vmem [resolvable:$true] %s18
      %24 = dma.hbm_to_vmem [thread:$0]  %s0, 1024, %s19, [#allocation3], 64, 64, 4
    $region5: #{tpu_custom_call.1} parent=1 // pred_fallthru
      _
    // Predicated region
    $region6: #{tpu_custom_call.1} parent=1 // pred_check
      _
    $region7: #{tpu_custom_call.1} parent=1 // pred_check_branch
      %26 = sbr.rel (0) target = $region9
    $region8: #{tpu_custom_call.1} parent=1 // pred_region
      %s28 = ssub.s32 64, 64
      %29 = vsyncadd [#allocation6], %s28
      %s31 = sshll.u32 [#allocation5], 4
      %s32 = int_to_ptr.vmem [resolvable:$true] %s31
      %34 = dma.hbm_to_vmem [thread:$0]  %s1, 64, %s32, [#allocation6]
    $region9: #{tpu_custom_call.1} parent=1 // pred_fallthru
      _
    // Predicated region
    $region10: #{tpu_custom_call.1} parent=1 // pred_check
      _
    $region11: #{tpu_custom_call.1} parent=1 // pred_check_branch
      %36 = sbr.rel (0) target = $region13
    $region12: #{tpu_custom_call.1} parent=1 // pred_region
      _
    $region13: #{tpu_custom_call.1} parent=1 // pred_fallthru
      _
    // Predicated region
    $region14: #{tpu_custom_call.1} parent=1 // pred_check
      _
    $region15: #{tpu_custom_call.1} parent=1 // pred_check_branch
      %38 = sbr.rel (0) target = $region17
    $region16: #{tpu_custom_call.1} parent=1 // pred_region
      _
    $region17: #{tpu_custom_call.1} parent=1 // pred_fallthru
      _
    // Predicated region
    $region18: #{tpu_custom_call.1} parent=1 // pred_check
      _
    $region19: #{tpu_custom_call.1} parent=1 // pred_check_branch
      %40 = sbr.rel (0) target = $region21
    $region20: #{tpu_custom_call.1} parent=1 // pred_region
      _
    $region21: #{tpu_custom_call.1} parent=1 // pred_fallthru
      _
    // Predicated region
    $region22: #{tpu_custom_call.1} parent=1 // pred_check
      _
    $region23: #{tpu_custom_call.1} parent=1 // pred_check_branch
      %42 = sbr.rel (0) target = $region25
    $region24: #{tpu_custom_call.1} parent=1 // pred_region
      %43 = dma.done [#allocation3], 1024
    $region25: #{tpu_custom_call.1} parent=1 // pred_fallthru
      _
    // Predicated region
    $region26: #{tpu_custom_call.1} parent=1 // pred_check
      _
    $region27: #{tpu_custom_call.1} parent=1 // pred_check_branch
      %45 = sbr.rel (0) target = $region29
    $region28: #{tpu_custom_call.1} parent=1 // pred_region
      %46 = dma.done [#allocation6], 64
    $region29: #{tpu_custom_call.1} parent=1 // pred_fallthru
      _
    %v48 = vld [vmem:[#allocation2] sm:$0xf]
    %v49 = vld [vmem:[#allocation2 + $0x4] sm:$0xf]
    %v50 = vld [vmem:[#allocation2 + $0x8] sm:$0xf]
    %v51 = vld [vmem:[#allocation2 + $0xc] sm:$0xf]
    %v52 = vld [vmem:[#allocation2 + $0x10] sm:$0xf]
    %v53 = vld [vmem:[#allocation2 + $0x14] sm:$0xf]
    %v54 = vld [vmem:[#allocation2 + $0x18] sm:$0xf]
    %v55 = vld [vmem:[#allocation2 + $0x1c] sm:$0xf]
    %v56 = vld [vmem:[#allocation2 + $0x20] sm:$0xf]
    %v57 = vld [vmem:[#allocation2 + $0x24] sm:$0xf]
    %v58 = vld [vmem:[#allocation2 + $0x28] sm:$0xf]
    %v59 = vld [vmem:[#allocation2 + $0x2c] sm:$0xf]
    %v60 = vld [vmem:[#allocation2 + $0x30] sm:$0xf]
    %v61 = vld [vmem:[#allocation2 + $0x34] sm:$0xf]
    %v62 = vld [vmem:[#allocation2 + $0x38] sm:$0xf]
    %v63 = vld [vmem:[#allocation2 + $0x3c] sm:$0xf]
    %v64 = vld [vmem:[#allocation5] sm:$0xf]
    %v65 = vlaneseq
    %v66 = vshrl.u32 %v65, 7
    %v67 = vsub.s32 0, %v66
    %v68 = vrot.slane %v64, %v67
    %v69 = vmul.f32 %v48, %v68
    %v70 = vmul.f32 %v49, %v68
    %v71 = vmul.f32 %v50, %v68
    %v72 = vmul.f32 %v51, %v68
    %v73 = vmul.f32 %v52, %v68
    %v74 = vmul.f32 %v53, %v68
    %v75 = vmul.f32 %v54, %v68
    %v76 = vmul.f32 %v55, %v68
    %v77 = vmul.f32 %v56, %v68
    %v78 = vmul.f32 %v57, %v68
    %v79 = vmul.f32 %v58, %v68
    %v80 = vmul.f32 %v59, %v68
    %v81 = vmul.f32 %v60, %v68
    %v82 = vmul.f32 %v61, %v68
    %v83 = vmul.f32 %v62, %v68
    %v84 = vmul.f32 %v63, %v68
    %v85 = vadd.f32 %v69, 0.0
    %v86 = vadd.f32 %v70, 0.0
    %v87 = vadd.f32 %v71, 0.0
    %v88 = vadd.f32 %v72, 0.0
    %v89 = vadd.f32 %v73, 0.0
    %v90 = vadd.f32 %v74, 0.0
    %v91 = vadd.f32 %v75, 0.0
    %v92 = vadd.f32 %v76, 0.0
    %v93 = vadd.f32 %v77, 0.0
    %v94 = vadd.f32 %v78, 0.0
    %v95 = vadd.f32 %v79, 0.0
    %v96 = vadd.f32 %v80, 0.0
    %v97 = vadd.f32 %v81, 0.0
    %v98 = vadd.f32 %v82, 0.0
    %v99 = vadd.f32 %v83, 0.0
    %v100 = vadd.f32 %v84, 0.0
    %v101 = vlaneseq
    %v102 = vshrl.u32 %v101, 7
    %v103 = vsub.s32 1, %v102
    %v104 = vrot.slane %v64, %v103
    %v105 = vmul.f32 %v48, %v104
    %v106 = vmul.f32 %v49, %v104
    %v107 = vmul.f32 %v50, %v104
    %v108 = vmul.f32 %v51, %v104
    %v109 = vmul.f32 %v52, %v104
    %v110 = vmul.f32 %v53, %v104
    %v111 = vmul.f32 %v54, %v104
    %v112 = vmul.f32 %v55, %v104
    %v113 = vmul.f32 %v56, %v104
    %v114 = vmul.f32 %v57, %v104
    %v115 = vmul.f32 %v58, %v104
    %v116 = vmul.f32 %v59, %v104
    %v117 = vmul.f32 %v60, %v104
    %v118 = vmul.f32 %v61, %v104
    %v119 = vmul.f32 %v62, %v104
    %v120 = vmul.f32 %v63, %v104
    %v137 = vrot.slane %v105, 1
    %v138 = vrot.slane %v106, 1
    %v139 = vrot.slane %v107, 1
    %v140 = vrot.slane %v108, 1
    %v141 = vrot.slane %v109, 1
    %v142 = vrot.slane %v110, 1
    %v143 = vrot.slane %v111, 1
    %v144 = vrot.slane %v112, 1
    %v145 = vrot.slane %v113, 1
    %v146 = vrot.slane %v114, 1
    %v147 = vrot.slane %v115, 1
    %v148 = vrot.slane %v116, 1
    %v149 = vrot.slane %v117, 1
    %v150 = vrot.slane %v118, 1
    %v151 = vrot.slane %v119, 1
    %v152 = vrot.slane %v120, 1
    %v169 = vadd.f32 %v85, %v137
    %v170 = vadd.f32 %v86, %v138
    %v171 = vadd.f32 %v87, %v139
    %v172 = vadd.f32 %v88, %v140
    %v173 = vadd.f32 %v89, %v141
    %v174 = vadd.f32 %v90, %v142
    %v175 = vadd.f32 %v91, %v143
    %v176 = vadd.f32 %v92, %v144
    %v177 = vadd.f32 %v93, %v145
    %v178 = vadd.f32 %v94, %v146
    %v179 = vadd.f32 %v95, %v147
    %v180 = vadd.f32 %v96, %v148
    %v181 = vadd.f32 %v97, %v149
    %v182 = vadd.f32 %v98, %v150
    %v183 = vadd.f32 %v99, %v151
    %v184 = vadd.f32 %v100, %v152
    %v185 = vlaneseq
    %v186 = vshrl.u32 %v185, 7
    %v187 = vsub.s32 2, %v186
    %v188 = vrot.slane %v64, %v187
    %v189 = vmul.f32 %v48, %v188
    %v190 = vmul.f32 %v49, %v188
    %v191 = vmul.f32 %v50, %v188
    %v192 = vmul.f32 %v51, %v188
    %v193 = vmul.f32 %v52, %v188
    %v194 = vmul.f32 %v53, %v188
    %v195 = vmul.f32 %v54, %v188
    %v196 = vmul.f32 %v55, %v188
    %v197 = vmul.f32 %v56, %v188
    %v198 = vmul.f32 %v57, %v188
    %v199 = vmul.f32 %v58, %v188
    %v200 = vmul.f32 %v59, %v188
    %v201 = vmul.f32 %v60, %v188
    %v202 = vmul.f32 %v61, %v188
    %v203 = vmul.f32 %v62, %v188
    %v204 = vmul.f32 %v63, %v188
    %v221 = vrot.slane %v189, 2
    %v222 = vrot.slane %v190, 2
    %v223 = vrot.slane %v191, 2
    %v224 = vrot.slane %v192, 2
    %v225 = vrot.slane %v193, 2
    %v226 = vrot.slane %v194, 2
    %v227 = vrot.slane %v195, 2
    %v228 = vrot.slane %v196, 2
    %v229 = vrot.slane %v197, 2
    %v230 = vrot.slane %v198, 2
    %v231 = vrot.slane %v199, 2
    %v232 = vrot.slane %v200, 2
    %v233 = vrot.slane %v201, 2
    %v234 = vrot.slane %v202, 2
    %v235 = vrot.slane %v203, 2
    %v236 = vrot.slane %v204, 2
    %v253 = vadd.f32 %v169, %v221
    %v254 = vadd.f32 %v170, %v222
    %v255 = vadd.f32 %v171, %v223
    %v256 = vadd.f32 %v172, %v224
    %v257 = vadd.f32 %v173, %v225
    %v258 = vadd.f32 %v174, %v226
    %v259 = vadd.f32 %v175, %v227
    %v260 = vadd.f32 %v176, %v228
    %v261 = vadd.f32 %v177, %v229
    %v262 = vadd.f32 %v178, %v230
    %v263 = vadd.f32 %v179, %v231
    %v264 = vadd.f32 %v180, %v232
    %v265 = vadd.f32 %v181, %v233
    %v266 = vadd.f32 %v182, %v234
    %v267 = vadd.f32 %v183, %v235
    %v268 = vadd.f32 %v184, %v236
    %v269 = vlaneseq
    %v270 = vshrl.u32 %v269, 7
    %v271 = vsub.s32 3, %v270
    %v272 = vrot.slane %v64, %v271
    %v273 = vmul.f32 %v48, %v272
    %v274 = vmul.f32 %v49, %v272
    %v275 = vmul.f32 %v50, %v272
    %v276 = vmul.f32 %v51, %v272
    %v277 = vmul.f32 %v52, %v272
    %v278 = vmul.f32 %v53, %v272
    %v279 = vmul.f32 %v54, %v272
    %v280 = vmul.f32 %v55, %v272
    %v281 = vmul.f32 %v56, %v272
    %v282 = vmul.f32 %v57, %v272
    %v283 = vmul.f32 %v58, %v272
    %v284 = vmul.f32 %v59, %v272
    %v285 = vmul.f32 %v60, %v272
    %v286 = vmul.f32 %v61, %v272
    %v287 = vmul.f32 %v62, %v272
    %v288 = vmul.f32 %v63, %v272
    %v305 = vrot.slane %v273, 3
    %v306 = vrot.slane %v274, 3
    %v307 = vrot.slane %v275, 3
    %v308 = vrot.slane %v276, 3
    %v309 = vrot.slane %v277, 3
    %v310 = vrot.slane %v278, 3
    %v311 = vrot.slane %v279, 3
    %v312 = vrot.slane %v280, 3
    %v313 = vrot.slane %v281, 3
    %v314 = vrot.slane %v282, 3
    %v315 = vrot.slane %v283, 3
    %v316 = vrot.slane %v284, 3
    %v317 = vrot.slane %v285, 3
    %v318 = vrot.slane %v286, 3
    %v319 = vrot.slane %v287, 3
    %v320 = vrot.slane %v288, 3
    %v337 = vadd.f32 %v253, %v305
    %v338 = vadd.f32 %v254, %v306
    %v339 = vadd.f32 %v255, %v307
    %v340 = vadd.f32 %v256, %v308
    %v341 = vadd.f32 %v257, %v309
    %v342 = vadd.f32 %v258, %v310
    %v343 = vadd.f32 %v259, %v311
    %v344 = vadd.f32 %v260, %v312
    %v345 = vadd.f32 %v261, %v313
    %v346 = vadd.f32 %v262, %v314
    %v347 = vadd.f32 %v263, %v315
    %v348 = vadd.f32 %v264, %v316
    %v349 = vadd.f32 %v265, %v317
    %v350 = vadd.f32 %v266, %v318
    %v351 = vadd.f32 %v267, %v319
    %v352 = vadd.f32 %v268, %v320
    %v353 = vld [vmem:[%s2] sm:$0x1]
    %v355 = vlaneseq
    %v356 = vshrl.u32 %v355, 7
    %v357 = vsub.s32 0, %v356
    %v358 = vrot.slane %v353, %v357
    %v360 = vadd.f32 %v337, %v358
    %v361 = vadd.f32 %v338, %v358
    %v362 = vadd.f32 %v339, %v358
    %v363 = vadd.f32 %v340, %v358
    %v364 = vadd.f32 %v341, %v358
    %v365 = vadd.f32 %v342, %v358
    %v366 = vadd.f32 %v343, %v358
    %v367 = vadd.f32 %v344, %v358
    %v368 = vadd.f32 %v345, %v358
    %v369 = vadd.f32 %v346, %v358
    %v370 = vadd.f32 %v347, %v358
    %v371 = vadd.f32 %v348, %v358
    %v372 = vadd.f32 %v349, %v358
    %v373 = vadd.f32 %v350, %v358
    %v374 = vadd.f32 %v351, %v358
    %v375 = vadd.f32 %v352, %v358
    %v376 = vmax.f32 %v360, 0.0
    %v377 = vmax.f32 %v361, 0.0
    %v378 = vmax.f32 %v362, 0.0
    %v379 = vmax.f32 %v363, 0.0
    %v380 = vmax.f32 %v364, 0.0
    %v381 = vmax.f32 %v365, 0.0
    %v382 = vmax.f32 %v366, 0.0
    %v383 = vmax.f32 %v367, 0.0
    %v384 = vmax.f32 %v368, 0.0
    %v385 = vmax.f32 %v369, 0.0
    %v386 = vmax.f32 %v370, 0.0
    %v387 = vmax.f32 %v371, 0.0
    %v388 = vmax.f32 %v372, 0.0
    %v389 = vmax.f32 %v373, 0.0
    %v390 = vmax.f32 %v374, 0.0
    %v391 = vmax.f32 %v375, 0.0
    %v392 = vpack.c.bf16 %v376, %v376
    %v393 = vpack.c.bf16 %v377, %v377
    %v394 = vpack.c.bf16 %v378, %v378
    %v395 = vpack.c.bf16 %v379, %v379
    %v396 = vpack.c.bf16 %v380, %v380
    %v397 = vpack.c.bf16 %v381, %v381
    %v398 = vpack.c.bf16 %v382, %v382
    %v399 = vpack.c.bf16 %v383, %v383
    %v400 = vpack.c.bf16 %v384, %v384
    %v401 = vpack.c.bf16 %v385, %v385
    %v402 = vpack.c.bf16 %v386, %v386
    %v403 = vpack.c.bf16 %v387, %v387
    %v404 = vpack.c.bf16 %v388, %v388
    %v405 = vpack.c.bf16 %v389, %v389
    %v406 = vpack.c.bf16 %v390, %v390
    %v407 = vpack.c.bf16 %v391, %v391
    %v408 = vld [vmem:[%s3] sm:$0xf]
    %v409 = vld [vmem:[%s3 + $0x4] sm:$0xf]
    %v410 = vld [vmem:[%s4] sm:$0x1]
    %v412 = vlaneseq
    %v413 = vshrl.u32 %v412, 7
    %v414 = vsub.s32 0, %v413
    %v415 = vrot.slane %v410, %v414
    %v433 = vunpack.c.l.b16 %v392
    %v434 = vunpack.c.l.b16 %v393
    %v435 = vunpack.c.l.b16 %v394
    %v436 = vunpack.c.l.b16 %v395
    %v437 = vunpack.c.l.b16 %v396
    %v438 = vunpack.c.l.b16 %v397
    %v439 = vunpack.c.l.b16 %v398
    %v440 = vunpack.c.l.b16 %v399
    %v441 = vunpack.c.l.b16 %v400
    %v442 = vunpack.c.l.b16 %v401
    %v443 = vunpack.c.l.b16 %v402
    %v444 = vunpack.c.l.b16 %v403
    %v445 = vunpack.c.l.b16 %v404
    %v446 = vunpack.c.l.b16 %v405
    %v447 = vunpack.c.l.b16 %v406
    %v448 = vunpack.c.l.b16 %v407
    %v449 = vrot.slane %v434, 7
    %vm450 = vcmask 1041409
    %v451 = vsel %vm450, %v449, %v433
    %v452 = vrot.slane %v435, 6
    %vm453 = vcmask 1042434
    %v454 = vsel %vm453, %v452, %v451
    %v455 = vrot.slane %v436, 5
    %vm456 = vcmask 1043459
    %v457 = vsel %vm456, %v455, %v454
    %v458 = vrot.slane %v437, 4
    %vm459 = vcmask 1044484
    %v460 = vsel %vm459, %v458, %v457
    %v461 = vrot.slane %v438, 3
    %vm462 = vcmask 1045509
    %v463 = vsel %vm462, %v461, %v460
    %v464 = vrot.slane %v439, 2
    %vm465 = vcmask 1046534
    %v466 = vsel %vm465, %v464, %v463
    %v467 = vrot.slane %v440, 1
    %vm468 = vcmask 1047559
    %v469 = vsel %vm468, %v467, %v466
    %v470 = vrot.slane %v442, 7
    %v471 = vsel %vm450, %v470, %v441
    %v472 = vrot.slane %v443, 6
    %v473 = vsel %vm453, %v472, %v471
    %v474 = vrot.slane %v444, 5
    %v475 = vsel %vm456, %v474, %v473
    %v476 = vrot.slane %v445, 4
    %v477 = vsel %vm459, %v476, %v475
    %v478 = vrot.slane %v446, 3
    %v479 = vsel %vm462, %v478, %v477
    %v480 = vrot.slane %v447, 2
    %v481 = vsel %vm465, %v480, %v479
    %v482 = vrot.slane %v448, 1
    %v483 = vsel %vm468, %v482, %v481
    %v484 = vpack.c.b16 %v483, %v469
    %v487 = vunpack.c.l.b16 %v408
    %v488 = vunpack.c.l.b16 %v409
    %v489 = vpack.c.b16 %v488, %v487
    %vm491 = vcmask 130048
    %v493 = vsel %vm491, %v484, 0
    %495 = vmatprep.subr.bf16.mxu0 0
    %496 = vmatpush1.bf16.msra.mxu0 %v489
    %497 = vmatprep.subr.bf16.mxu0 0
    %498 = vmatpush1.bf16.msra.mxu0 0
    %499 = vmatprep.subr.bf16.mxu0 0
    %500 = vmatpush1.bf16.msra.mxu0 0
    %501 = vmatprep.subr.bf16.mxu0 0
    %502 = vmatpush1.bf16.msra.mxu0 0
    %503 = vmatprep.subr.bf16.mxu0 0
    %504 = vmatpush1.bf16.msra.mxu0 0
    %505 = vmatprep.subr.bf16.mxu0 0
    %506 = vmatpush1.bf16.msra.mxu0 0
    %507 = vmatprep.subr.bf16.mxu0 0
    %508 = vmatpush1.bf16.msra.mxu0 0
    %509 = vmatprep.subr.bf16.mxu0 0
    %510 = vmatpush1.bf16.msra.mxu0 0
    %511 = vmatprep.subr.bf16.mxu0 0
    %512 = vmatpush1.bf16.msra.mxu0 0
    %513 = vmatprep.subr.bf16.mxu0 0
    %514 = vmatpush1.bf16.msra.mxu0 0
    %515 = vmatprep.subr.bf16.mxu0 0
    %516 = vmatpush1.bf16.msra.mxu0 0
    %517 = vmatprep.subr.bf16.mxu0 0
    %518 = vmatpush1.bf16.msra.mxu0 0
    %519 = vmatprep.subr.bf16.mxu0 0
    %520 = vmatpush1.bf16.msra.mxu0 0
    %521 = vmatprep.subr.bf16.mxu0 0
    %522 = vmatpush1.bf16.msra.mxu0 0
    %523 = vmatprep.subr.bf16.mxu0 0
    %524 = vmatpush1.bf16.msra.mxu0 0
    %525 = vmatprep.subr.bf16.mxu0 0
    %526 = vmatpush1.bf16.msra.mxu0 0
    %527 = vmatprep.mubr.bf16.mxu0 0
    %528 = vmatmul.mubr.bf16.gmra.mrb[0].mxu0 %v493
    %v529 = vpop.f32.mrb[0].mxu0
    %v530 = vadd.f32 %v415, %v529
    %v531 = vpop.f32.mrb[0].mxu0
    %v532 = vpop.f32.mrb[0].mxu0
    %v533 = vadd.f32 %v415, %v532
    %v534 = vpop.f32.mrb[0].mxu0
    %535 = vdwg.mxu0
    %536 = vst [vmem:[#allocation7] sm:$0xff] %v530
    %537 = vst [vmem:[#allocation7 + $0x8] sm:$0xff] %v533
    // Predicated region
    $region30: #{tpu_custom_call.1} parent=1 // pred_check
      _
    $region31: #{tpu_custom_call.1} parent=1 // pred_check_branch
      %539 = sbr.rel (0) target = $region33
    $region32: #{tpu_custom_call.1} parent=1 // pred_region
      %s541 = ssub.s32 256, 256
      %542 = vsyncadd [#allocation4], %s541
      %s543 = sshll.u32 [#allocation7], 4
      %s544 = int_to_ptr.vmem [resolvable:$true] %s543
      %549 = dma.vmem_to_hbm [thread:$0]  %s544, 256, %s5, [#allocation4], 128, 128, 8
    $region33: #{tpu_custom_call.1} parent=1 // pred_fallthru
      _
    // Predicated region
    $region34: #{tpu_custom_call.1} parent=1 // pred_check
      _
    $region35: #{tpu_custom_call.1} parent=1 // pred_check_branch
      %551 = sbr.rel (0) target = $region37
    $region36: #{tpu_custom_call.1} parent=1 // pred_region
      %552 = dma.done [#allocation4], 256
    $region37: #{tpu_custom_call.1} parent=1 // pred_fallthru
      _
    %553 = vsyncpa [#allocation3], 1
    %554 = vsyncpa [#allocation6], 1
    %555 = vsyncpa [#allocation4], 1

</llo_original>
